<compile_context>
chip_gen: v7x
topology: tpu7x:2x2x1
jax: 0.10.0
libtpu: 0.0.40
codegen_flags: <defaults>
</compile_context>

<pallas_src>
import functools

import numpy as np
import jax
import jax.numpy as jnp
from jax.experimental import pallas as pl
from jax.experimental.pallas import tpu as pltpu

ROWS, LANES = 8, 128      # one f32 VPU vreg tile
N1 = 3                    # spike1: n_inputs=2 + 1 connection (spike2)
N2 = 2                    # spike2: n_inputs=1 + 1 connection (spike1)
G2_OFF = 4                # spike2's nodes live in rows/lanes 4..5
THRESH = 0.7

# State-tile row layout (each row is a lane-broadcast 0.0/1.0 flag):
R_S1_SPK, R_S1_TOS, R_S2_SPK, R_S2_TOS = 0, 1, 2, 3


def _neuron_update(x0, x1, state, w, row, lane, thresh):
    """One fused Net.forward() update, entirely inside a single (8,128) f32 vreg.

    x0, x1 : f32 SMEM scalars in {0,1} (boolified external inputs)
    state  : (8,128) f32 state tile (lane-broadcast rows, layout above)
    w      : (8,128) f32 zero-diagonal weight tile (rows/lanes 0..2 = W1, 4..5 = W2)
    Returns (new_state, s1_return, s2_return); the returns are the post-update
    `spiking` flags (what each SpikingNeuron.forward returns), lane-broadcast.
    """
    zeros = jnp.zeros((ROWS, LANES), jnp.float32)
    # Hoisted lane-broadcast copies of the stored flags (rows are lane-constant).
    s1_tos = jnp.broadcast_to(state[R_S1_TOS:R_S1_TOS + 1, :], (ROWS, LANES))
    s2_spk = jnp.broadcast_to(state[R_S2_SPK:R_S2_SPK + 1, :], (ROWS, LANES))
    s2_tos = jnp.broadcast_to(state[R_S2_TOS:R_S2_TOS + 1, :], (ROWS, LANES))

    # spike1's node inputs occupy lanes 0..2 = [x0, x1, spike2.spiking(old)]
    # spike2's node inputs occupy lanes 4..5 = [x1, spike1.spiking(new) = old to_spike1]
    x_lane = jnp.where(lane == 0, x0, zeros)
    x_lane = jnp.where((lane == 1) | (lane == G2_OFF + 0), x1, x_lane)
    x_lane = jnp.where(lane == 2, s2_spk, x_lane)
    x_lane = jnp.where(lane == G2_OFF + 1, s1_tos, x_lane)

    # per-node "self" value x[i] (same values, keyed by row instead of lane)
    x_self = jnp.where(row == 0, x0, zeros)
    x_self = jnp.where((row == 1) | (row == G2_OFF + 0), x1, x_self)
    x_self = jnp.where(row == 2, s2_spk, x_self)
    x_self = jnp.where(row == G2_OFF + 1, s1_tos, x_self)

    # node potential v[i] = sum_j W[i,j] * x[j]  (diag(W)==0 => j != i); XLU lane reduce
    v = jnp.sum(w * x_lane, axis=-1, keepdims=True)                        # (8,1)
    # fires[i] = (v[i] >= thresh) and (not x[i]); padding rows have W==0 -> never fire
    fires = jnp.where((v >= thresh) & (x_self < 0.5), 1.0, 0.0)            # (8,128)

    # to_spike = any(node fires) per neuron (sublane reduce, XLU)
    g1 = jnp.sum(jnp.where(row < N1, fires, 0.0), axis=0, keepdims=True)   # (1,128)
    g2 = jnp.sum(jnp.where((row >= G2_OFF) & (row < G2_OFF + N2), fires, 0.0),
                 axis=0, keepdims=True)                                    # (1,128)
    to1 = jnp.broadcast_to(jnp.where(g1 > 0.0, 1.0, 0.0), (ROWS, LANES))
    to2 = jnp.broadcast_to(jnp.where(g2 > 0.0, 1.0, 0.0), (ROWS, LANES))

    # flip-flop: spiking <- old to_spike ; to_spike <- fires computed now
    new_state = jnp.where(row == R_S1_SPK, s1_tos, zeros)
    new_state = jnp.where(row == R_S1_TOS, to1, new_state)
    new_state = jnp.where(row == R_S2_SPK, s2_tos, new_state)
    new_state = jnp.where(row == R_S2_TOS, to2, new_state)
    return new_state, s1_tos, s2_tos


def net_rollout_kernel(x_ref, s0_ref, w_ref, s_out_ref, spk_ref, s_scr, *, thresh):
    """grid=(T,): one fused Net.forward() per grid step; state carried in VMEM scratch.

    x_ref     : SMEM (2*T,) f32  flattened boolified inputs [x0(0), x1(0), x0(1), ...]
    s0_ref    : VMEM (8,128) f32 initial state tile
    w_ref     : VMEM (8,128) f32 constant zero-diagonal weights
    s_out_ref : VMEM (8,128) f32 final state tile (same block every step -> resident)
    spk_ref   : VMEM (8,128) f32 per-step returns; row0 lane t = s1(t), row1 lane t = s2(t)
    s_scr     : VMEM (8,128) f32 recurrent state scratch
    """
    t = pl.program_id(0)
    lane = jax.lax.broadcasted_iota(jnp.int32, (ROWS, LANES), 1)
    row = jax.lax.broadcasted_iota(jnp.int32, (ROWS, LANES), 0)

    @pl.when(t == 0)
    def _():
        s_scr[...] = s0_ref[...]
        spk_ref[...] = jnp.zeros_like(spk_ref)

    x0 = x_ref[2 * t]
    x1 = x_ref[2 * t + 1]
    new_state, s1_ret, s2_ret = _neuron_update(x0, x1, s_scr[...], w_ref[...],
                                               row, lane, thresh)

    # record this step's forward() returns at lane t of the (resident) output tile
    rec = jnp.where(row == 0, s1_ret, jnp.where(row == 1, s2_ret, 0.0))
    spk_ref[...] = jnp.where(lane == t, rec, spk_ref[...])
    s_scr[...] = new_state
    s_out_ref[...] = new_state


def build_weight_tile(W1, W2):
    """One-time padding of both neurons' node weights into a single zero-diag tile."""
    Wp = jnp.zeros((ROWS, LANES), jnp.float32)
    Wp = Wp.at[:N1, :N1].set(W1.astype(jnp.float32) * (1.0 - jnp.eye(N1, dtype=jnp.float32)))
    Wp = Wp.at[G2_OFF:G2_OFF + N2, G2_OFF:G2_OFF + N2].set(
        W2.astype(jnp.float32) * (1.0 - jnp.eye(N2, dtype=jnp.float32)))
    return Wp


def init_state():
    return jnp.zeros((ROWS, LANES), jnp.float32)   # spiking = to_spike = False


def make_net_rollout(T, thresh=THRESH):
    """T fused Net.forward() steps in ONE pallas_call (T=1 == a single forward)."""
    assert 1 <= T <= LANES, "per-step returns are recorded one lane each"
    call = pl.pallas_call(
        functools.partial(net_rollout_kernel, thresh=thresh),
        out_shape=(jax.ShapeDtypeStruct((ROWS, LANES), jnp.float32),    # final state
                   jax.ShapeDtypeStruct((ROWS, LANES), jnp.float32)),   # per-step spikes
        grid_spec=pltpu.PrefetchScalarGridSpec(
            num_scalar_prefetch=0,
            grid=(T,),
            in_specs=[
                pl.BlockSpec(memory_space=pltpu.MemorySpace.SMEM),      # x sequence
                pl.BlockSpec((ROWS, LANES), lambda t: (0, 0)),          # initial state
                pl.BlockSpec((ROWS, LANES), lambda t: (0, 0)),          # constant weights
            ],
            out_specs=(pl.BlockSpec((ROWS, LANES), lambda t: (0, 0)),
                       pl.BlockSpec((ROWS, LANES), lambda t: (0, 0))),
            scratch_shapes=[pltpu.VMEM((ROWS, LANES), jnp.float32)],
        ),
        compiler_params=pltpu.CompilerParams(
            dimension_semantics=("arbitrary",)),     # recurrent state across grid steps
        cost_estimate=pl.CostEstimate(
            flops=40 * T * ROWS * LANES, transcendentals=0,
            bytes_accessed=(2 * T + 4 * ROWS * LANES) * 4),
    )

    def rollout(x_seq, state_tile, w_tile):
        """x_seq: (T,2) external inputs; returns (s1_seq, s2_seq, final_state_tile)."""
        xb = (x_seq != 0).astype(jnp.float32).reshape(-1)    # torch .bool() semantics
        final_state, spikes = call(xb, state_tile, w_tile)
        s1_seq = spikes[0, :T] > 0.5      # spike1.forward() return at each step
        s2_seq = spikes[1, :T] > 0.5      # spike2.forward() return at each step
        return s1_seq, s2_seq, final_state

    return jax.jit(rollout)


def ref_rollout(x_seq, W1, W2, thresh):
    """Direct python port of the torch semantics (Node == zero-diag weighted sum)."""
    W1 = np.asarray(W1, np.float32)
    W2 = np.asarray(W2, np.float32)
    th = np.float32(thresh)
    s1_spk = s1_tos = s2_spk = s2_tos = False
    s1_out, s2_out = [], []
    for t in range(x_seq.shape[0]):
        x0, x1 = bool(x_seq[t, 0]), bool(x_seq[t, 1])
        # spike1.forward([x0, x1]); connections = [spike2]
        xf = [x0, x1, s2_spk]
        s1_spk, s1_tos = s1_tos, False
        for i in range(N1):
            v = np.float32(0.0)
            for j in range(N1):
                if j != i:
                    v = np.float32(v + W1[i, j] * np.float32(xf[j]))
            if v >= th and not xf[i]:
                s1_tos = True
        s1_out.append(s1_spk)
        # spike2.forward([x1]); connections = [spike1]
        xf = [x1, s1_spk]
        s2_spk, s2_tos = s2_tos, False
        for i in range(N2):
            v = np.float32(0.0)
            for j in range(N2):
                if j != i:
                    v = np.float32(v + W2[i, j] * np.float32(xf[j]))
            if v >= th and not xf[i]:
                s2_tos = True
        s2_out.append(s2_spk)
    return (np.array(s1_out), np.array(s2_out),
            np.array([s1_spk, s1_tos, s2_spk, s2_tos], np.float32))


if __name__ == "__main__":
    key = jax.random.PRNGKey(0)
    k_x, k_w1, k_w2 = jax.random.split(key, 3)

    # Net: spike1 has 3 nodes (n_inputs=2 + connection to spike2), spike2 has 2 nodes.
    W1 = jax.random.uniform(k_w1, (N1, N1), jnp.float32, minval=0.0, maxval=1.0)
    W2 = jax.random.uniform(k_w2, (N2, N2), jnp.float32, minval=0.0, maxval=1.0)
    w_tile = build_weight_tile(W1, W2)           # constant, padded once

    T = 8
    x_seq = jax.random.bernoulli(k_x, 0.5, (T, 2)).astype(jnp.float32)
    state0 = init_state()

    # --- single Net.forward() == T=1 rollout; chain two steps across separate calls ---
    step = make_net_rollout(1)
    s1_a, s2_a, st = step(x_seq[0:1], state0, w_tile)
    s1_b, s2_b, st = step(x_seq[1:2], st, w_tile)
    jax.block_until_ready((s1_a, s2_a, s1_b, s2_b, st))

    # --- full T-step rollout fused into ONE pallas_call (amortizes launch overhead) ---
    rollout = make_net_rollout(T)
    s1_seq, s2_seq, state_T = rollout(x_seq, state0, w_tile)
    jax.block_until_ready((s1_seq, s2_seq, state_T))

    # --- verify against the python port of the torch semantics ---
    ref_s1, ref_s2, ref_state = ref_rollout(np.asarray(x_seq), W1, W2, THRESH)
    assert np.array_equal(np.asarray(s1_seq), ref_s1.astype(bool))
    assert np.array_equal(np.asarray(s2_seq), ref_s2.astype(bool))
    assert np.array_equal(np.asarray([bool(s1_a[0]), bool(s1_b[0])]), ref_s1[:2].astype(bool))
    assert np.array_equal(np.asarray([bool(s2_a[0]), bool(s2_b[0])]), ref_s2[:2].astype(bool))
    assert np.allclose(np.asarray(state_T[:4, 0]), ref_state)

    print("KERNEL_OK")
</pallas_src>

<mosaic_0001>
module attributes {stable_mosaic.version = 11 : i64} {
  func.func @net_rollout_kernel(%arg0: i32, %arg1: memref<2xf32, #tpu.memory_space<smem>>, %arg2: memref<8x128xf32, #tpu.memory_space<vmem>>, %arg3: memref<8x128xf32, #tpu.memory_space<vmem>>, %arg4: memref<8x128xf32, #tpu.memory_space<vmem>>, %arg5: memref<8x128xf32, #tpu.memory_space<vmem>>, %arg6: memref<8x128xf32, #tpu.memory_space<vmem>>) attributes {dimension_semantics = [#tpu.dimension_semantics<arbitrary>], iteration_bounds = array<i64: 1>, scalar_prefetch = 0 : i64, scratch_operands = 1 : i64, tpu.core_type = #tpu.core_type<tc>, window_params = [{transform_indices = @transform_0, window_bounds = array<i64: 2>}, {pipeline_mode = #tpu.pipeline_mode<synchronous>, transform_indices = @transform_1, window_bounds = array<i64: 8, 128>}, {pipeline_mode = #tpu.pipeline_mode<synchronous>, transform_indices = @transform_2, window_bounds = array<i64: 8, 128>}, {pipeline_mode = #tpu.pipeline_mode<synchronous>, transform_indices = @transform_3, window_bounds = array<i64: 8, 128>}, {pipeline_mode = #tpu.pipeline_mode<synchronous>, transform_indices = @transform_4, window_bounds = array<i64: 8, 128>}]} {
    %0 = tpu.iota {dimensions = array<i32: 1>} : vector<8x128xi32>
    %1 = tpu.iota {dimensions = array<i32: 0>} : vector<8x128xi32>
    %c0_i32 = arith.constant 0 : i32
    %2 = arith.cmpi eq, %arg0, %c0_i32 : i32
    %3 = arith.extui %2 : i1 to i32
    %c0_i32_0 = arith.constant 0 : i32
    %4 = arith.cmpi ne, %3, %c0_i32_0 : i32
    scf.if %4 {
      %c0_44 = arith.constant 0 : index
      %c0_45 = arith.constant 0 : index
      %125 = vector.load %arg2[%c0_44, %c0_45] : memref<8x128xf32, #tpu.memory_space<vmem>>, vector<8x128xf32>
      %c0_46 = arith.constant 0 : index
      %c0_47 = arith.constant 0 : index
      %126 = vector.load %arg6[%c0_46, %c0_47] : memref<8x128xf32, #tpu.memory_space<vmem>>, vector<8x128xf32>
      tpu.vector_store %arg6[%c0_46, %c0_47], %125 {strides = array<i32>} : memref<8x128xf32, #tpu.memory_space<vmem>>, vector<8x128xf32>,
      %cst_48 = arith.constant 0.000000e+00 : f32
      %127 = vector.broadcast %cst_48 : f32 to vector<8x128xf32>
      %c0_49 = arith.constant 0 : index
      %c0_50 = arith.constant 0 : index
      %128 = vector.load %arg5[%c0_49, %c0_50] : memref<8x128xf32, #tpu.memory_space<vmem>>, vector<8x128xf32>
      tpu.vector_store %arg5[%c0_49, %c0_50], %127 {strides = array<i32>} : memref<8x128xf32, #tpu.memory_space<vmem>>, vector<8x128xf32>,
    } else {
    }
    %c2_i32 = arith.constant 2 : i32
    %5 = arith.muli %c2_i32, %arg0 : i32
    %6 = arith.index_cast %5 : i32 to index
    %7 = memref.load %arg1[%6] : memref<2xf32, #tpu.memory_space<smem>>
    %c2_i32_1 = arith.constant 2 : i32
    %8 = arith.muli %c2_i32_1, %arg0 : i32
    %c1_i32 = arith.constant 1 : i32
    %9 = arith.addi %8, %c1_i32 : i32
    %10 = arith.index_cast %9 : i32 to index
    %11 = memref.load %arg1[%10] : memref<2xf32, #tpu.memory_space<smem>>
    %c0 = arith.constant 0 : index
    %c0_2 = arith.constant 0 : index
    %12 = vector.load %arg6[%c0, %c0_2] : memref<8x128xf32, #tpu.memory_space<vmem>>, vector<8x128xf32>
    %c0_3 = arith.constant 0 : index
    %c0_4 = arith.constant 0 : index
    %13 = vector.load %arg3[%c0_3, %c0_4] : memref<8x128xf32, #tpu.memory_space<vmem>>, vector<8x128xf32>
    %cst = arith.constant 0.000000e+00 : f32
    %14 = vector.broadcast %cst : f32 to vector<8x128xf32>
    %15 = vector.extract_strided_slice %12 {offsets = [1, 0], sizes = [1, 128], strides = [1, 1]} : vector<8x128xf32> to vector<1x128xf32>
    %16 = vector.shape_cast %15 : vector<1x128xf32> to vector<1x128xf32>
    %17 = vector.broadcast %16 : vector<1x128xf32> to vector<8x128xf32>
    %18 = vector.extract_strided_slice %12 {offsets = [2, 0], sizes = [1, 128], strides = [1, 1]} : vector<8x128xf32> to vector<1x128xf32>
    %19 = vector.shape_cast %18 : vector<1x128xf32> to vector<1x128xf32>
    %20 = vector.broadcast %19 : vector<1x128xf32> to vector<8x128xf32>
    %21 = vector.extract_strided_slice %12 {offsets = [3, 0], sizes = [1, 128], strides = [1, 1]} : vector<8x128xf32> to vector<1x128xf32>
    %22 = vector.shape_cast %21 : vector<1x128xf32> to vector<1x128xf32>
    %23 = vector.broadcast %22 : vector<1x128xf32> to vector<8x128xf32>
    %c0_i32_5 = arith.constant 0 : i32
    %24 = vector.broadcast %c0_i32_5 : i32 to vector<8x128xi32>
    %25 = arith.cmpi eq, %0, %24 : vector<8x128xi32>
    %26 = vector.broadcast %7 : f32 to vector<8x128xf32>
    %27 = arith.select %25, %26, %14 : vector<8x128xi1>, vector<8x128xf32>
    %c1_i32_6 = arith.constant 1 : i32
    %28 = vector.broadcast %c1_i32_6 : i32 to vector<8x128xi32>
    %29 = arith.cmpi eq, %0, %28 : vector<8x128xi32>
    %c4_i32 = arith.constant 4 : i32
    %30 = vector.broadcast %c4_i32 : i32 to vector<8x128xi32>
    %31 = arith.cmpi eq, %0, %30 : vector<8x128xi32>
    %32 = arith.ori %29, %31 : vector<8x128xi1>
    %33 = vector.broadcast %11 : f32 to vector<8x128xf32>
    %34 = arith.select %32, %33, %27 : vector<8x128xi1>, vector<8x128xf32>
    %c2_i32_7 = arith.constant 2 : i32
    %35 = vector.broadcast %c2_i32_7 : i32 to vector<8x128xi32>
    %36 = arith.cmpi eq, %0, %35 : vector<8x128xi32>
    %37 = arith.select %36, %20, %34 : vector<8x128xi1>, vector<8x128xf32>
    %c5_i32 = arith.constant 5 : i32
    %38 = vector.broadcast %c5_i32 : i32 to vector<8x128xi32>
    %39 = arith.cmpi eq, %0, %38 : vector<8x128xi32>
    %40 = arith.select %39, %17, %37 : vector<8x128xi1>, vector<8x128xf32>
    %c0_i32_8 = arith.constant 0 : i32
    %41 = vector.broadcast %c0_i32_8 : i32 to vector<8x128xi32>
    %42 = arith.cmpi eq, %1, %41 : vector<8x128xi32>
    %43 = vector.broadcast %7 : f32 to vector<8x128xf32>
    %44 = arith.select %42, %43, %14 : vector<8x128xi1>, vector<8x128xf32>
    %c1_i32_9 = arith.constant 1 : i32
    %45 = vector.broadcast %c1_i32_9 : i32 to vector<8x128xi32>
    %46 = arith.cmpi eq, %1, %45 : vector<8x128xi32>
    %c4_i32_10 = arith.constant 4 : i32
    %47 = vector.broadcast %c4_i32_10 : i32 to vector<8x128xi32>
    %48 = arith.cmpi eq, %1, %47 : vector<8x128xi32>
    %49 = arith.ori %46, %48 : vector<8x128xi1>
    %50 = vector.broadcast %11 : f32 to vector<8x128xf32>
    %51 = arith.select %49, %50, %44 : vector<8x128xi1>, vector<8x128xf32>
    %c2_i32_11 = arith.constant 2 : i32
    %52 = vector.broadcast %c2_i32_11 : i32 to vector<8x128xi32>
    %53 = arith.cmpi eq, %1, %52 : vector<8x128xi32>
    %54 = arith.select %53, %20, %51 : vector<8x128xi1>, vector<8x128xf32>
    %c5_i32_12 = arith.constant 5 : i32
    %55 = vector.broadcast %c5_i32_12 : i32 to vector<8x128xi32>
    %56 = arith.cmpi eq, %1, %55 : vector<8x128xi32>
    %57 = arith.select %56, %17, %54 : vector<8x128xi1>, vector<8x128xf32>
    %58 = arith.mulf %13, %40 : vector<8x128xf32>
    %cst_13 = arith.constant dense<0.000000e+00> : vector<8xf32>
    %59 = vector.multi_reduction <add>, %58, %cst_13 [1] : vector<8x128xf32> to vector<8xf32>
    %60 = vector.shape_cast %59 : vector<8xf32> to vector<8x1xf32>
    %cst_14 = arith.constant 0.699999988 : f32
    %61 = vector.broadcast %cst_14 : f32 to vector<8x1xf32>
    %62 = arith.cmpf oge, %60, %61 : vector<8x1xf32>
    %cst_15 = arith.constant 5.000000e-01 : f32
    %63 = vector.broadcast %cst_15 : f32 to vector<8x128xf32>
    %64 = arith.cmpf olt, %57, %63 : vector<8x128xf32>
    %65 = vector.broadcast %62 : vector<8x1xi1> to vector<8x128xi1>
    %66 = arith.andi %65, %64 : vector<8x128xi1>
    %cst_16 = arith.constant 1.000000e+00 : f32
    %cst_17 = arith.constant 0.000000e+00 : f32
    %67 = vector.broadcast %cst_16 : f32 to vector<8x128xf32>
    %68 = vector.broadcast %cst_17 : f32 to vector<8x128xf32>
    %69 = arith.select %66, %67, %68 : vector<8x128xi1>, vector<8x128xf32>
    %c3_i32 = arith.constant 3 : i32
    %70 = vector.broadcast %c3_i32 : i32 to vector<8x128xi32>
    %71 = arith.cmpi slt, %1, %70 : vector<8x128xi32>
    %cst_18 = arith.constant 0.000000e+00 : f32
    %72 = vector.broadcast %cst_18 : f32 to vector<8x128xf32>
    %73 = arith.select %71, %69, %72 : vector<8x128xi1>, vector<8x128xf32>
    %cst_19 = arith.constant dense<0.000000e+00> : vector<128xf32>
    %74 = vector.multi_reduction <add>, %73, %cst_19 [0] : vector<8x128xf32> to vector<128xf32>
    %75 = vector.shape_cast %74 : vector<128xf32> to vector<1x128xf32>
    %c4_i32_20 = arith.constant 4 : i32
    %76 = vector.broadcast %c4_i32_20 : i32 to vector<8x128xi32>
    %77 = arith.cmpi sge, %1, %76 : vector<8x128xi32>
    %c6_i32 = arith.constant 6 : i32
    %78 = vector.broadcast %c6_i32 : i32 to vector<8x128xi32>
    %79 = arith.cmpi slt, %1, %78 : vector<8x128xi32>
    %80 = arith.andi %77, %79 : vector<8x128xi1>
    %cst_21 = arith.constant 0.000000e+00 : f32
    %81 = vector.broadcast %cst_21 : f32 to vector<8x128xf32>
    %82 = arith.select %80, %69, %81 : vector<8x128xi1>, vector<8x128xf32>
    %cst_22 = arith.constant dense<0.000000e+00> : vector<128xf32>
    %83 = vector.multi_reduction <add>, %82, %cst_22 [0] : vector<8x128xf32> to vector<128xf32>
    %84 = vector.shape_cast %83 : vector<128xf32> to vector<1x128xf32>
    %cst_23 = arith.constant 0.000000e+00 : f32
    %85 = vector.broadcast %cst_23 : f32 to vector<1x128xf32>
    %86 = arith.cmpf ogt, %75, %85 : vector<1x128xf32>
    %cst_24 = arith.constant 1.000000e+00 : f32
    %cst_25 = arith.constant 0.000000e+00 : f32
    %87 = vector.broadcast %cst_24 : f32 to vector<1x128xf32>
    %88 = vector.broadcast %cst_25 : f32 to vector<1x128xf32>
    %89 = arith.select %86, %87, %88 : vector<1x128xi1>, vector<1x128xf32>
    %90 = vector.shape_cast %89 : vector<1x128xf32> to vector<1x128xf32>
    %91 = vector.broadcast %90 : vector<1x128xf32> to vector<8x128xf32>
    %cst_26 = arith.constant 0.000000e+00 : f32
    %92 = vector.broadcast %cst_26 : f32 to vector<1x128xf32>
    %93 = arith.cmpf ogt, %84, %92 : vector<1x128xf32>
    %cst_27 = arith.constant 1.000000e+00 : f32
    %cst_28 = arith.constant 0.000000e+00 : f32
    %94 = vector.broadcast %cst_27 : f32 to vector<1x128xf32>
    %95 = vector.broadcast %cst_28 : f32 to vector<1x128xf32>
    %96 = arith.select %93, %94, %95 : vector<1x128xi1>, vector<1x128xf32>
    %97 = vector.shape_cast %96 : vector<1x128xf32> to vector<1x128xf32>
    %98 = vector.broadcast %97 : vector<1x128xf32> to vector<8x128xf32>
    %c0_i32_29 = arith.constant 0 : i32
    %99 = vector.broadcast %c0_i32_29 : i32 to vector<8x128xi32>
    %100 = arith.cmpi eq, %1, %99 : vector<8x128xi32>
    %101 = arith.select %100, %17, %14 : vector<8x128xi1>, vector<8x128xf32>
    %c1_i32_30 = arith.constant 1 : i32
    %102 = vector.broadcast %c1_i32_30 : i32 to vector<8x128xi32>
    %103 = arith.cmpi eq, %1, %102 : vector<8x128xi32>
    %104 = arith.select %103, %91, %101 : vector<8x128xi1>, vector<8x128xf32>
    %c2_i32_31 = arith.constant 2 : i32
    %105 = vector.broadcast %c2_i32_31 : i32 to vector<8x128xi32>
    %106 = arith.cmpi eq, %1, %105 : vector<8x128xi32>
    %107 = arith.select %106, %23, %104 : vector<8x128xi1>, vector<8x128xf32>
    %c3_i32_32 = arith.constant 3 : i32
    %108 = vector.broadcast %c3_i32_32 : i32 to vector<8x128xi32>
    %109 = arith.cmpi eq, %1, %108 : vector<8x128xi32>
    %110 = arith.select %109, %98, %107 : vector<8x128xi1>, vector<8x128xf32>
    %c0_i32_33 = arith.constant 0 : i32
    %111 = vector.broadcast %c0_i32_33 : i32 to vector<8x128xi32>
    %112 = arith.cmpi eq, %1, %111 : vector<8x128xi32>
    %c1_i32_34 = arith.constant 1 : i32
    %113 = vector.broadcast %c1_i32_34 : i32 to vector<8x128xi32>
    %114 = arith.cmpi eq, %1, %113 : vector<8x128xi32>
    %cst_35 = arith.constant 0.000000e+00 : f32
    %115 = vector.broadcast %cst_35 : f32 to vector<8x128xf32>
    %116 = arith.select %114, %23, %115 : vector<8x128xi1>, vector<8x128xf32>
    %117 = arith.select %112, %17, %116 : vector<8x128xi1>, vector<8x128xf32>
    %118 = vector.broadcast %arg0 : i32 to vector<8x128xi32>
    %119 = arith.cmpi eq, %0, %118 : vector<8x128xi32>
    %c0_36 = arith.constant 0 : index
    %c0_37 = arith.constant 0 : index
    %120 = vector.load %arg5[%c0_36, %c0_37] : memref<8x128xf32, #tpu.memory_space<vmem>>, vector<8x128xf32>
    %121 = arith.select %119, %117, %120 : vector<8x128xi1>, vector<8x128xf32>
    %c0_38 = arith.constant 0 : index
    %c0_39 = arith.constant 0 : index
    %122 = vector.load %arg5[%c0_38, %c0_39] : memref<8x128xf32, #tpu.memory_space<vmem>>, vector<8x128xf32>
    tpu.vector_store %arg5[%c0_38, %c0_39], %121 {strides = array<i32>} : memref<8x128xf32, #tpu.memory_space<vmem>>, vector<8x128xf32>,
    %c0_40 = arith.constant 0 : index
    %c0_41 = arith.constant 0 : index
    %123 = vector.load %arg6[%c0_40, %c0_41] : memref<8x128xf32, #tpu.memory_space<vmem>>, vector<8x128xf32>
    tpu.vector_store %arg6[%c0_40, %c0_41], %110 {strides = array<i32>} : memref<8x128xf32, #tpu.memory_space<vmem>>, vector<8x128xf32>,
    %c0_42 = arith.constant 0 : index
    %c0_43 = arith.constant 0 : index
    %124 = vector.load %arg4[%c0_42, %c0_43] : memref<8x128xf32, #tpu.memory_space<vmem>>, vector<8x128xf32>
    tpu.vector_store %arg4[%c0_42, %c0_43], %110 {strides = array<i32>} : memref<8x128xf32, #tpu.memory_space<vmem>>, vector<8x128xf32>,
    return
  }
  func.func @transform_0(%arg0: i32) -> i32 {
    %c0_i32 = arith.constant 0 : i32
    %c0_i32_0 = arith.constant 0 : i32
    return %c0_i32 : i32
  }
  func.func @transform_1(%arg0: i32) -> (i32, i32) {
    %c0_i32 = arith.constant 0 : i32
    %c0_i32_0 = arith.constant 0 : i32
    %c0_i32_1 = arith.constant 0 : i32
    return %c0_i32, %c0_i32_0 : i32, i32
  }
  func.func @transform_2(%arg0: i32) -> (i32, i32) {
    %c0_i32 = arith.constant 0 : i32
    %c0_i32_0 = arith.constant 0 : i32
    %c0_i32_1 = arith.constant 0 : i32
    return %c0_i32, %c0_i32_0 : i32, i32
  }
  func.func @transform_3(%arg0: i32) -> (i32, i32) {
    %c0_i32 = arith.constant 0 : i32
    %c0_i32_0 = arith.constant 0 : i32
    %c0_i32_1 = arith.constant 0 : i32
    return %c0_i32, %c0_i32_0 : i32, i32
  }
  func.func @transform_4(%arg0: i32) -> (i32, i32) {
    %c0_i32 = arith.constant 0 : i32
    %c0_i32_0 = arith.constant 0 : i32
    %c0_i32_1 = arith.constant 0 : i32
    return %c0_i32, %c0_i32_0 : i32, i32
  }
}

</mosaic_0001>

<llo_original>
// kernel: rollout.1
$region0: #{rollout.1}
  #allocation0 [shape = 'u32[]', space=smem, size = 0x4, offset = 0x4, fixed_abs, tag = 'smem constant byte address 0x4 - core index']
  #allocation1 [shape = 'u32[144,128]{1,0:T(1,128)}', space=vmem, size = 0x12000, scoped, tag = 'internal scratch']
  #allocation2 [shape = 'f32[8,128]{1,0:T(8,128)}', space=vmem, size = 0x1000, scoped, tag = 'scratch operand']
  %s0 = inlined_call_operand.vmem [shape: f32[2], index: 0, kind: input, shape index: {}]
  %s1 = inlined_call_operand.hbm [shape: f32[8,128], index: 1, kind: input, shape index: {}]
  %s2 = inlined_call_operand.vmem [shape: f32[8,128], index: 2, kind: input, shape index: {}]
  %s3 = inlined_call_operand.hbm [shape: f32[8,128], index: 3, kind: output, shape index: {0}]
  %s4 = inlined_call_operand.vmem [shape: f32[8,128], index: 4, kind: output, shape index: {1}]
  %5 = xla_tuple %s3, %s4
  %s6 = sld [smem:[#allocation0]]
  $region42: #{rollout.1} parent=0
    _
  %s8 = ssub.s32 1, %s6
  %s9 = scalar_select 0, %s8, %s6
  $region1: #{rollout.1} parent=0
    #allocation3 [shape = 'u8[512]{0}', space=smem, size = 0x200, scoped, tag = 'input window, operand 0, single buffered']
    #allocation4 [shape = 's32[1]{0}', space=sflag, size = 0x4, scoped, tag = 'scoped memory for rollout.1']
    #allocation5 [shape = 's32[1]{0}', space=sflag, size = 0x4, scoped, tag = 'scoped memory for rollout.1']
    #allocation6 [shape = 's32[1]{0}', space=sflag, size = 0x4, scoped, tag = 'scoped memory for rollout.1']
    #allocation7 [shape = 'u8[4096]{0}', space=vmem, size = 0x1000, scoped, tag = 'input window, operand 1, single buffered']
    #allocation8 [shape = 'u8[4096]{0}', space=vmem, size = 0x1000, scoped, tag = 'output window, operand 0, single buffered']
    %10 = vsyncpa [#allocation6], 0
    %11 = vsyncpa [#allocation4], 0
    %12 = vsyncpa [#allocation5], 0
    // Predicated region
    $region2: #{rollout.1} parent=1 // pred_check
      _
    $region3: #{rollout.1} parent=1 // pred_check_branch
      %14 = sbr.rel (0) target = $region5
    $region4: #{rollout.1} parent=1 // pred_region
      %s16 = ssub.s32 16, 16
      %17 = vsyncadd [#allocation6], %s16
      %s19 = sshll.u32 %s0, 4
      %s20 = int_to_ptr.vmem [resolvable:$true] %s19
      %22 = dma.vmem_to_smem %s20, 16, [#allocation3], [#allocation6]
    $region5: #{rollout.1} parent=1 // pred_fallthru
      _
    // Predicated region
    $region6: #{rollout.1} parent=1 // pred_check
      _
    $region7: #{rollout.1} parent=1 // pred_check_branch
      %24 = sbr.rel (0) target = $region9
    $region8: #{rollout.1} parent=1 // pred_region
      %s26 = ssub.s32 128, 128
      %27 = vsyncadd [#allocation4], %s26
      %s29 = sshll.u32 [#allocation7], 4
      %s30 = int_to_ptr.vmem [resolvable:$true] %s29
      %32 = dma.hbm_to_vmem [thread:$0]  %s1, 128, %s30, [#allocation4]
    $region9: #{rollout.1} parent=1 // pred_fallthru
      _
    // Predicated region
    $region10: #{rollout.1} parent=1 // pred_check
      _
    $region11: #{rollout.1} parent=1 // pred_check_branch
      %34 = sbr.rel (0) target = $region13
    $region12: #{rollout.1} parent=1 // pred_region
      _
    $region13: #{rollout.1} parent=1 // pred_fallthru
      _
    // Predicated region
    $region14: #{rollout.1} parent=1 // pred_check
      _
    $region15: #{rollout.1} parent=1 // pred_check_branch
      %36 = sbr.rel (0) target = $region17
    $region16: #{rollout.1} parent=1 // pred_region
      %37 = dma.done [#allocation6], 16
    $region17: #{rollout.1} parent=1 // pred_fallthru
      _
    // Predicated region
    $region18: #{rollout.1} parent=1 // pred_check
      _
    $region19: #{rollout.1} parent=1 // pred_check_branch
      %39 = sbr.rel (0) target = $region21
    $region20: #{rollout.1} parent=1 // pred_region
      %40 = dma.done [#allocation4], 128
    $region21: #{rollout.1} parent=1 // pred_fallthru
      _
    %41 = sfence
    %v42 = vlaneseq
    %v43 = vand.u32 %v42, 127
    %v44 = vlaneseq
    %v45 = vshrl.u32 %v44, 7
    %p46 = scmp.eq.s32.totalorder 0, 0
    // Predicated region
    $region22: #{rollout.1} parent=1 // pred_check
      %p47 = pneg %p46
    $region23: #{rollout.1} parent=1 // pred_check_branch
      %49 = sbr.rel (%p47) target = $region25
    $region24: #{rollout.1} parent=1 // pred_region
      %v50 = vld [vmem:[#allocation7] sm:$0xff]
      %51 = vst [vmem:[#allocation2] sm:$0xff] %v50
      %52 = vst [vmem:[%s4] sm:$0xff] 0.0
    $region25: #{rollout.1} parent=1 // pred_fallthru
      _
    %s53 = smul.u32 0, 2
    %s54 = sld [smem:[#allocation3 + %s53]]
    %s55 = sadd.s32 %s53, 1
    %s56 = sld [smem:[#allocation3 + %s55]]
    %v57 = vld [vmem:[#allocation2] sm:$0xff]
    %v58 = vld [vmem:[%s2] sm:$0xff]
    %v59 = vlaneseq
    %v60 = vshrl.u32 %v59, 7
    %v61 = vsub.s32 1, %v60
    %v62 = vrot.slane %v57, %v61
    %v63 = vlaneseq
    %v64 = vshrl.u32 %v63, 7
    %v65 = vsub.s32 2, %v64
    %v66 = vrot.slane %v57, %v65
    %v67 = vlaneseq
    %v68 = vshrl.u32 %v67, 7
    %v69 = vsub.s32 3, %v68
    %v70 = vrot.slane %v57, %v69
    %vm71 = vcmp.eq.s32.totalorder %v43, 0
    %v72 = vstv %s54
    %v73 = vsel %vm71, %v72, 0.0
    %vm74 = vcmp.eq.s32.totalorder %v43, 1
    %vm75 = vcmp.eq.s32.totalorder %v43, 4
    %vm76 = vmor %vm74, %vm75
    %v77 = vstv %s56
    %v78 = vsel %vm76, %v77, %v73
    %vm79 = vcmp.eq.s32.totalorder %v43, 2
    %v80 = vsel %vm79, %v66, %v78
    %vm81 = vcmp.eq.s32.totalorder %v43, 5
    %v82 = vsel %vm81, %v62, %v80
    %vm83 = vcmp.eq.s32.totalorder %v45, 0
    %v84 = vsel %vm83, %v72, 0.0
    %vm85 = vcmp.eq.s32.totalorder %v45, 1
    %vm86 = vcmp.eq.s32.totalorder %v45, 4
    %vm87 = vmor %vm85, %vm86
    %v88 = vsel %vm87, %v77, %v84
    %vm89 = vcmp.eq.s32.totalorder %v45, 2
    %v90 = vsel %vm89, %v66, %v88
    %vm91 = vcmp.eq.s32.totalorder %v45, 5
    %v92 = vsel %vm91, %v62, %v90
    %v93 = vmul.f32 %v58, %v82
    %94 = vadd.xlane.f32.xlu0 %v93
    %v95 = vpop.xlane.xlu0 %94
    %vm96 = vcmp.ge.f32.partialorder %v95, 0.7
    %vm97 = vcmp.lt.f32.partialorder %v92, 0.5
    %v98 = vsel %vm96, 1, 0
    %vm99 = vcmp.eq.s32.totalorder %v98, 1
    %vm100 = vmand %vm99, %vm97
    %v101 = vsel %vm100, 1.0, 0.0
    %vm102 = vcmp.lt.s32.totalorder %v45, 3
    %v103 = vsel %vm102, %v101, 0.0
    %v104 = vrot.slane %v103, 4
    %v105 = vadd.f32 %v103, %v104
    %v106 = vrot.slane %v105, 2
    %v107 = vadd.f32 %v105, %v106
    %v108 = vrot.slane %v107, 1
    %v109 = vadd.f32 %v107, %v108
    %vm110 = vcmp.ge.s32.totalorder %v45, 4
    %vm111 = vcmp.lt.s32.totalorder %v45, 6
    %vm112 = vmand %vm110, %vm111
    %v113 = vsel %vm112, %v101, 0.0
    %v114 = vrot.slane %v113, 4
    %v115 = vadd.f32 %v113, %v114
    %v116 = vrot.slane %v115, 2
    %v117 = vadd.f32 %v115, %v116
    %v118 = vrot.slane %v117, 1
    %v119 = vadd.f32 %v117, %v118
    %vm120 = vcmp.gt.f32.partialorder %v109, 0.0
    %v121 = vsel %vm120, 1.0, 0.0
    %vm122 = vcmp.gt.f32.partialorder %v119, 0.0
    %v123 = vsel %vm122, 1.0, 0.0
    %v124 = vsel %vm83, %v62, 0.0
    %v125 = vsel %vm85, %v121, %v124
    %v126 = vsel %vm89, %v70, %v125
    %vm127 = vcmp.eq.s32.totalorder %v45, 3
    %v128 = vsel %vm127, %v123, %v126
    %v129 = vsel %vm85, %v70, 0.0
    %v130 = vsel %vm83, %v62, %v129
    %v131 = vstv 0
    %vm132 = vcmp.eq.s32.totalorder %v43, %v131
    %v133 = vld [vmem:[%s4] sm:$0xff]
    %v134 = vsel %vm132, %v130, %v133
    %135 = vst [vmem:[%s4] sm:$0xff] %v134
    %136 = vst [vmem:[#allocation2] sm:$0xff] %v128
    %137 = vst [vmem:[#allocation8] sm:$0xff] %v128
    // Predicated region
    $region26: #{rollout.1} parent=1 // pred_check
      _
    $region27: #{rollout.1} parent=1 // pred_check_branch
      %139 = sbr.rel (0) target = $region29
    $region28: #{rollout.1} parent=1 // pred_region
      %s141 = ssub.s32 128, 128
      %142 = vsyncadd [#allocation5], %s141
      %s144 = sshll.u32 [#allocation8], 4
      %s145 = int_to_ptr.vmem [resolvable:$true] %s144
      %147 = dma.vmem_to_hbm [thread:$0]  %s145, 128, %s3, [#allocation5]
    $region29: #{rollout.1} parent=1 // pred_fallthru
      _
    // Predicated region
    $region30: #{rollout.1} parent=1 // pred_check
      _
    $region31: #{rollout.1} parent=1 // pred_check_branch
      %149 = sbr.rel (0) target = $region33
    $region32: #{rollout.1} parent=1 // pred_region
      _
    $region33: #{rollout.1} parent=1 // pred_fallthru
      _
    // Predicated region
    $region34: #{rollout.1} parent=1 // pred_check
      _
    $region35: #{rollout.1} parent=1 // pred_check_branch
      %151 = sbr.rel (0) target = $region37
    $region36: #{rollout.1} parent=1 // pred_region
      %152 = dma.done [#allocation5], 128
    $region37: #{rollout.1} parent=1 // pred_fallthru
      _
    // Predicated region
    $region38: #{rollout.1} parent=1 // pred_check
      _
    $region39: #{rollout.1} parent=1 // pred_check_branch
      %154 = sbr.rel (0) target = $region41
    $region40: #{rollout.1} parent=1 // pred_region
      _
    $region41: #{rollout.1} parent=1 // pred_fallthru
      _
    %155 = vsyncpa [#allocation4], 1
    %156 = vsyncpa [#allocation5], 1
    %157 = vsyncpa [#allocation6], 1

</llo_original>
